<compile_context>
chip_gen: v5e
topology: v5e:2x2
jax: 0.10.0
libtpu: 0.0.40
codegen_flags: <defaults>
</compile_context>

<pallas_src>
import functools

import jax
import jax.numpy as jnp
from jax.experimental import pallas as pl
from jax.experimental.pallas import tpu as pltpu


def _round_up(x: int, m: int) -> int:
    return (x + m - 1) // m * m


def _pick_tb(batch: int) -> int:
    """Batch tile: multiple of 16; exact single tile for small batches,
    256-row tiles for large batches (grid >= 2 -> megacore sharding, and
    padding waste bounded by one tile)."""
    b16 = _round_up(batch, 16)
    if b16 <= 256:
        return b16
    return 256


# --------------------------------------------------------------------------- #
# Kernel
# --------------------------------------------------------------------------- #
def _policy_kernel(obs_ref, w1_ref, w2_ref, wm_ref, bias_ref, *out_refs, hp, ap):
    # obs_ref: (TB, OBSP) bf16 | w1: (OBSP, HP) bf16 | w2: (HP, HP) bf16
    # wm: (HP, AP) bf16 | bias: (1, HP+HP+AP) f32
    # out_refs[0]: act (TB, AP) f32 ; out_refs[1] (optional): mean (TB, AP) f32
    obs = obs_ref[...]

    b1 = bias_ref[:, 0:hp]
    b2 = bias_ref[:, hp:2 * hp]
    bm = bias_ref[:, 2 * hp:2 * hp + ap]

    # hidden layer 1: bf16 MXU matmul, f32 accumulate, bias + ReLU in f32
    h1 = jnp.dot(obs, w1_ref[...], preferred_element_type=jnp.float32)
    h1 = jnp.maximum(h1 + b1, 0.0).astype(jnp.bfloat16)

    # hidden layer 2
    h2 = jnp.dot(h1, w2_ref[...], preferred_element_type=jnp.float32)
    h2 = jnp.maximum(h2 + b2, 0.0).astype(jnp.bfloat16)

    # mean head (deterministic action = tanh(mean); log_std head irrelevant)
    mean = jnp.dot(h2, wm_ref[...], preferred_element_type=jnp.float32) + bm

    act_ref = out_refs[0]
    act_ref[...] = jnp.tanh(mean).astype(act_ref.dtype)
    if len(out_refs) == 2:          # direct slice-free store, no concat temp
        out_refs[1][...] = mean.astype(out_refs[1].dtype)


# --------------------------------------------------------------------------- #
# One-time parameter preparation (hoisted out of the per-call path)
# --------------------------------------------------------------------------- #
def prepare_params(params):
    """Pad/cast the weights once.  Returns (prepared_arrays, dims)."""
    w1, b1, w2, b2, wm, bm = (params[k] for k in
                              ("w1", "b1", "w2", "b2", "wm", "bm"))
    obs_dim, hidden = w1.shape
    action_dim = wm.shape[1]

    OBSP = _round_up(obs_dim, 128)
    HP = _round_up(hidden, 128)
    AP = _round_up(action_dim, 128)

    bf16, f32 = jnp.bfloat16, jnp.float32

    w1_p = jnp.pad(w1.astype(bf16), ((0, OBSP - obs_dim), (0, HP - hidden)))
    w2_p = jnp.pad(w2.astype(bf16), ((0, HP - hidden), (0, HP - hidden)))
    wm_p = jnp.pad(wm.astype(bf16), ((0, HP - hidden), (0, AP - action_dim)))

    # all three biases packed into one (1, HP+HP+AP) f32 buffer (one tiny DMA)
    bias_p = jnp.concatenate([
        jnp.pad(b1.astype(f32).reshape(1, -1), ((0, 0), (0, HP - hidden))),
        jnp.pad(b2.astype(f32).reshape(1, -1), ((0, 0), (0, HP - hidden))),
        jnp.pad(bm.astype(f32).reshape(1, -1), ((0, 0), (0, AP - action_dim))),
    ], axis=1)

    prepared = dict(w1=w1_p, w2=w2_p, wm=wm_p, bias=bias_p)
    dims = (obs_dim, hidden, action_dim)
    return prepared, dims


# --------------------------------------------------------------------------- #
# Forward
# --------------------------------------------------------------------------- #
def make_deterministic_forward(obs, prepared, *, dims, return_mean=True):
    """Deterministic forward of the wrapped TanhGaussianPolicy.

    Returns `action` (and `pre_tanh_mean` if return_mean) in float32.
    """
    obs_dim, hidden, action_dim = dims
    w1_p, w2_p, wm_p, bias_p = (prepared[k] for k in ("w1", "w2", "wm", "bias"))

    OBSP, HP = w1_p.shape
    AP = wm_p.shape[1]
    batch = obs.shape[0]

    TB = _pick_tb(batch)
    Bp = _round_up(batch, TB)
    grid = (Bp // TB,)

    # per-call work: only the obs tile needs padding / casting
    obs_p = jnp.pad(obs.astype(jnp.bfloat16),
                    ((0, Bp - batch), (0, OBSP - obs_dim)))

    n_out = 2 if return_mean else 1
    out_shape = tuple(jax.ShapeDtypeStruct((Bp, AP), jnp.float32)
                      for _ in range(n_out))
    out_specs = tuple(pl.BlockSpec((TB, AP), lambda i: (i, 0))
                      for _ in range(n_out))

    # explicit VMEM budget: double-buffered residents + pipelined obs/out tiles
    resident = 2 * 2 * (w1_p.size + w2_p.size + wm_p.size) + 2 * 4 * bias_p.size
    tiles = 2 * (TB * OBSP * 2 + n_out * TB * AP * 4)
    vmem_limit = min(max(resident + tiles + (4 << 20), 32 << 20), 64 << 20)

    cost = pl.CostEstimate(
        flops=2 * Bp * (OBSP * HP + HP * HP + HP * AP),
        transcendentals=Bp * AP,
        bytes_accessed=(obs_p.size * 2 + w1_p.size * 2 + w2_p.size * 2
                        + wm_p.size * 2 + bias_p.size * 4
                        + n_out * Bp * AP * 4),
    )

    kernel = functools.partial(_policy_kernel, hp=HP, ap=AP)

    outs = pl.pallas_call(
        kernel,
        out_shape=out_shape,
        grid=grid,
        in_specs=[
            pl.BlockSpec((TB, OBSP), lambda i: (i, 0)),          # obs tile
            pl.BlockSpec((OBSP, HP), lambda i: (0, 0)),          # W1 (resident)
            pl.BlockSpec((HP, HP), lambda i: (0, 0)),            # W2 (resident)
            pl.BlockSpec((HP, AP), lambda i: (0, 0)),            # W_mean (resident)
            pl.BlockSpec((1, HP + HP + AP), lambda i: (0, 0)),   # packed biases
        ],
        out_specs=out_specs,
        compiler_params=pltpu.CompilerParams(
            dimension_semantics=("parallel",),
            vmem_limit_bytes=int(vmem_limit)),
        cost_estimate=cost,
    )(obs_p, w1_p, w2_p, wm_p, bias_p)

    act = outs[0][:batch, :action_dim]
    if return_mean:
        mean = outs[1][:batch, :action_dim]
        return act, mean
    return act


# --------------------------------------------------------------------------- #
# Synthetic parameter init + self-test
# --------------------------------------------------------------------------- #
def init_params(key, obs_dim, hidden, action_dim):
    """Deterministic synthetic parameter init (fan-in scaled normal)."""
    ks = jax.random.split(key, 6)

    def lin(kw, kb, fan_in, fan_out):
        scale = 1.0 / jnp.sqrt(jnp.float32(fan_in))
        w = jax.random.normal(kw, (fan_in, fan_out), jnp.float32) * scale
        b = jax.random.normal(kb, (1, fan_out), jnp.float32) * 0.01
        return w, b

    w1, b1 = lin(ks[0], ks[1], obs_dim, hidden)
    w2, b2 = lin(ks[2], ks[3], hidden, hidden)
    wm, bm = lin(ks[4], ks[5], hidden, action_dim)
    return dict(w1=w1, b1=b1, w2=w2, b2=b2, wm=wm, bm=bm)


if __name__ == "__main__":
    key = jax.random.PRNGKey(0)
    k_obs, k_par = jax.random.split(key)

    batch, obs_dim, hidden, action_dim = 8, 16, 32, 8
    obs = jax.random.normal(k_obs, (batch, obs_dim), jnp.float32)
    params = init_params(k_par, obs_dim, hidden, action_dim)

    # one-time preparation (would live at policy construction time)
    prepared, dims = prepare_params(params)
    prepared = jax.block_until_ready(prepared)

    fwd = jax.jit(functools.partial(make_deterministic_forward, dims=dims))
    act, mean = fwd(obs, prepared)
    jax.block_until_ready((act, mean))

    # reference check in plain JAX, with the same bf16-weight / f32-accum recipe
    bf16, f32 = jnp.bfloat16, jnp.float32
    obs_b = obs.astype(bf16)
    w1_b, w2_b, wm_b = (params[k].astype(bf16) for k in ("w1", "w2", "wm"))
    h1 = jnp.maximum(jnp.dot(obs_b, w1_b, preferred_element_type=f32)
                     + params["b1"], 0.0).astype(bf16)
    h2 = jnp.maximum(jnp.dot(h1, w2_b, preferred_element_type=f32)
                     + params["b2"], 0.0).astype(bf16)
    ref_mean = jnp.dot(h2, wm_b, preferred_element_type=f32) + params["bm"]
    ref_act = jnp.tanh(ref_mean)

    assert jnp.allclose(act, ref_act, atol=1e-2, rtol=1e-2), "action mismatch"
    assert jnp.allclose(mean, ref_mean, atol=1e-2, rtol=1e-2), "mean mismatch"

    # action-only path (halved output writeback) must match too
    act_only = jax.jit(functools.partial(make_deterministic_forward,
                                         dims=dims, return_mean=False))(obs, prepared)
    jax.block_until_ready(act_only)
    assert jnp.allclose(act_only, ref_act, atol=1e-2, rtol=1e-2), "act-only mismatch"

    print("KERNEL_OK")
</pallas_src>

<mosaic_0001>
module attributes {stable_mosaic.version = 11 : i64} {
  func.func @_policy_kernel(%arg0: i32, %arg1: memref<16x128xbf16, #tpu.memory_space<vmem>>, %arg2: memref<128x128xbf16, #tpu.memory_space<vmem>>, %arg3: memref<128x128xbf16, #tpu.memory_space<vmem>>, %arg4: memref<128x128xbf16, #tpu.memory_space<vmem>>, %arg5: memref<1x384xf32, #tpu.memory_space<vmem>>, %arg6: memref<16x128xf32, #tpu.memory_space<vmem>>, %arg7: memref<16x128xf32, #tpu.memory_space<vmem>>) attributes {dimension_semantics = [#tpu.dimension_semantics<parallel>], iteration_bounds = array<i64: 1>, scalar_prefetch = 0 : i64, scratch_operands = 0 : i64, tpu.core_type = #tpu.core_type<tc>, window_params = [{transform_indices = @transform_0, window_bounds = array<i64: 16, 128>}, {pipeline_mode = #tpu.pipeline_mode<synchronous>, transform_indices = @transform_1, window_bounds = array<i64: 128, 128>}, {pipeline_mode = #tpu.pipeline_mode<synchronous>, transform_indices = @transform_2, window_bounds = array<i64: 128, 128>}, {pipeline_mode = #tpu.pipeline_mode<synchronous>, transform_indices = @transform_3, window_bounds = array<i64: 128, 128>}, {pipeline_mode = #tpu.pipeline_mode<synchronous>, transform_indices = @transform_4, window_bounds = array<i64: 1, 384>}, {transform_indices = @transform_5, window_bounds = array<i64: 16, 128>}, {transform_indices = @transform_6, window_bounds = array<i64: 16, 128>}]} {
    %c0 = arith.constant 0 : index
    %c0_0 = arith.constant 0 : index
    %0 = vector.load %arg1[%c0, %c0_0] : memref<16x128xbf16, #tpu.memory_space<vmem>>, vector<16x128xbf16>
    %c0_1 = arith.constant 0 : index
    %c0_2 = arith.constant 0 : index
    %1 = vector.load %arg5[%c0_1, %c0_2] : memref<1x384xf32, #tpu.memory_space<vmem>>, vector<1x128xf32>
    %c0_3 = arith.constant 0 : index
    %c128 = arith.constant 128 : index
    %2 = vector.load %arg5[%c0_3, %c128] : memref<1x384xf32, #tpu.memory_space<vmem>>, vector<1x128xf32>
    %c0_4 = arith.constant 0 : index
    %c256 = arith.constant 256 : index
    %3 = vector.load %arg5[%c0_4, %c256] : memref<1x384xf32, #tpu.memory_space<vmem>>, vector<1x128xf32>
    %c0_5 = arith.constant 0 : index
    %c0_6 = arith.constant 0 : index
    %4 = vector.load %arg2[%c0_5, %c0_6] : memref<128x128xbf16, #tpu.memory_space<vmem>>, vector<128x128xbf16>
    %cst = arith.constant dense<0.000000e+00> : vector<16x128xf32>
    %5 = tpu.matmul %0, %4, %cst {dimension_numbers = #tpu.dot_dimension_numbers<[1], [0], [0], [1], [0, 0, 1, 1], [], []>} : vector<16x128xbf16>, vector<128x128xbf16>, vector<16x128xf32> -> vector<16x128xf32>
    %6 = vector.broadcast %1 : vector<1x128xf32> to vector<16x128xf32>
    %7 = arith.addf %5, %6 : vector<16x128xf32>
    %cst_7 = arith.constant 0.000000e+00 : f32
    %8 = vector.broadcast %cst_7 : f32 to vector<16x128xf32>
    %9 = arith.maximumf %7, %8 : vector<16x128xf32>
    %10 = arith.truncf %9 : vector<16x128xf32> to vector<16x128xbf16>
    %c0_8 = arith.constant 0 : index
    %c0_9 = arith.constant 0 : index
    %11 = vector.load %arg3[%c0_8, %c0_9] : memref<128x128xbf16, #tpu.memory_space<vmem>>, vector<128x128xbf16>
    %cst_10 = arith.constant dense<0.000000e+00> : vector<16x128xf32>
    %12 = tpu.matmul %10, %11, %cst_10 {dimension_numbers = #tpu.dot_dimension_numbers<[1], [0], [0], [1], [0, 0, 1, 1], [], []>} : vector<16x128xbf16>, vector<128x128xbf16>, vector<16x128xf32> -> vector<16x128xf32>
    %13 = vector.broadcast %2 : vector<1x128xf32> to vector<16x128xf32>
    %14 = arith.addf %12, %13 : vector<16x128xf32>
    %cst_11 = arith.constant 0.000000e+00 : f32
    %15 = vector.broadcast %cst_11 : f32 to vector<16x128xf32>
    %16 = arith.maximumf %14, %15 : vector<16x128xf32>
    %17 = arith.truncf %16 : vector<16x128xf32> to vector<16x128xbf16>
    %c0_12 = arith.constant 0 : index
    %c0_13 = arith.constant 0 : index
    %18 = vector.load %arg4[%c0_12, %c0_13] : memref<128x128xbf16, #tpu.memory_space<vmem>>, vector<128x128xbf16>
    %cst_14 = arith.constant dense<0.000000e+00> : vector<16x128xf32>
    %19 = tpu.matmul %17, %18, %cst_14 {dimension_numbers = #tpu.dot_dimension_numbers<[1], [0], [0], [1], [0, 0, 1, 1], [], []>} : vector<16x128xbf16>, vector<128x128xbf16>, vector<16x128xf32> -> vector<16x128xf32>
    %20 = vector.broadcast %3 : vector<1x128xf32> to vector<16x128xf32>
    %21 = arith.addf %19, %20 : vector<16x128xf32>
    %22 = math.tanh %21 : vector<16x128xf32>
    %c0_15 = arith.constant 0 : index
    %c0_16 = arith.constant 0 : index
    %23 = vector.load %arg6[%c0_15, %c0_16] : memref<16x128xf32, #tpu.memory_space<vmem>>, vector<16x128xf32>
    tpu.vector_store %arg6[%c0_15, %c0_16], %22 {strides = array<i32>} : memref<16x128xf32, #tpu.memory_space<vmem>>, vector<16x128xf32>,
    %c0_17 = arith.constant 0 : index
    %c0_18 = arith.constant 0 : index
    %24 = vector.load %arg7[%c0_17, %c0_18] : memref<16x128xf32, #tpu.memory_space<vmem>>, vector<16x128xf32>
    tpu.vector_store %arg7[%c0_17, %c0_18], %21 {strides = array<i32>} : memref<16x128xf32, #tpu.memory_space<vmem>>, vector<16x128xf32>,
    return
  }
  func.func @transform_0(%arg0: i32) -> (i32, i32) {
    %c0_i32 = arith.constant 0 : i32
    %c0_i32_0 = arith.constant 0 : i32
    return %arg0, %c0_i32 : i32, i32
  }
  func.func @transform_1(%arg0: i32) -> (i32, i32) {
    %c0_i32 = arith.constant 0 : i32
    %c0_i32_0 = arith.constant 0 : i32
    %c0_i32_1 = arith.constant 0 : i32
    return %c0_i32, %c0_i32_0 : i32, i32
  }
  func.func @transform_2(%arg0: i32) -> (i32, i32) {
    %c0_i32 = arith.constant 0 : i32
    %c0_i32_0 = arith.constant 0 : i32
    %c0_i32_1 = arith.constant 0 : i32
    return %c0_i32, %c0_i32_0 : i32, i32
  }
  func.func @transform_3(%arg0: i32) -> (i32, i32) {
    %c0_i32 = arith.constant 0 : i32
    %c0_i32_0 = arith.constant 0 : i32
    %c0_i32_1 = arith.constant 0 : i32
    return %c0_i32, %c0_i32_0 : i32, i32
  }
  func.func @transform_4(%arg0: i32) -> (i32, i32) {
    %c0_i32 = arith.constant 0 : i32
    %c0_i32_0 = arith.constant 0 : i32
    %c0_i32_1 = arith.constant 0 : i32
    return %c0_i32, %c0_i32_0 : i32, i32
  }
  func.func @transform_5(%arg0: i32) -> (i32, i32) {
    %c0_i32 = arith.constant 0 : i32
    %c0_i32_0 = arith.constant 0 : i32
    return %arg0, %c0_i32 : i32, i32
  }
  func.func @transform_6(%arg0: i32) -> (i32, i32) {
    %c0_i32 = arith.constant 0 : i32
    %c0_i32_0 = arith.constant 0 : i32
    return %arg0, %c0_i32 : i32, i32
  }
}

</mosaic_0001>

<llo_original>
// kernel: make_deterministic_forward.1
$region0: #{make_deterministic_forward.1}
  #allocation0 [shape = 'u32[]', space=smem, size = 0x4, offset = 0x4, fixed_abs, tag = 'smem constant byte address 0x4 - core index']
  #allocation1 [shape = 'u32[72,128]{1,0:T(1,128)}', space=vmem, size = 0x9000, scoped, tag = 'internal scratch']
  %s0 = inlined_call_operand.vmem [shape: bf16[16,128], index: 0, kind: input, shape index: {}]
  %s1 = inlined_call_operand.hbm [shape: bf16[128,128], index: 1, kind: input, shape index: {}]
  %s2 = inlined_call_operand.hbm [shape: bf16[128,128], index: 2, kind: input, shape index: {}]
  %s3 = inlined_call_operand.hbm [shape: bf16[128,128], index: 3, kind: input, shape index: {}]
  %s4 = inlined_call_operand.vmem [shape: f32[1,384], index: 4, kind: input, shape index: {}]
  %s5 = inlined_call_operand.vmem [shape: f32[16,128], index: 5, kind: output, shape index: {0}]
  %s6 = inlined_call_operand.vmem [shape: f32[16,128], index: 6, kind: output, shape index: {1}]
  %7 = xla_tuple %s5, %s6
  %s8 = sld [smem:[#allocation0]]
  $region50: #{make_deterministic_forward.1} parent=0
    _
  %s10 = ssub.s32 1, %s8
  %s11 = scalar_select 0, %s10, %s8
  $region1: #{make_deterministic_forward.1} parent=0
    #allocation2 [shape = 'u8[32768]{0}', space=vmem, size = 0x8000, scoped, tag = 'input window, operand 1, single buffered']
    #allocation3 [shape = 's32[1]{0}', space=sflag, size = 0x4, scoped, tag = 'scoped memory for make_deterministic_forward.1']
    #allocation4 [shape = 'u8[32768]{0}', space=vmem, size = 0x8000, scoped, tag = 'input window, operand 2, single buffered']
    #allocation5 [shape = 's32[1]{0}', space=sflag, size = 0x4, scoped, tag = 'scoped memory for make_deterministic_forward.1']
    #allocation6 [shape = 'u8[32768]{0}', space=vmem, size = 0x8000, scoped, tag = 'input window, operand 3, single buffered']
    %12 = vsyncpa [#allocation3], 0
    %13 = vsyncpa [#allocation5], 0
    // Predicated region
    $region2: #{make_deterministic_forward.1} parent=1 // pred_check
      _
    $region3: #{make_deterministic_forward.1} parent=1 // pred_check_branch
      %15 = sbr.rel (0) target = $region5
    $region4: #{make_deterministic_forward.1} parent=1 // pred_region
      _
    $region5: #{make_deterministic_forward.1} parent=1 // pred_fallthru
      _
    // Predicated region
    $region6: #{make_deterministic_forward.1} parent=1 // pred_check
      _
    $region7: #{make_deterministic_forward.1} parent=1 // pred_check_branch
      %17 = sbr.rel (0) target = $region9
    $region8: #{make_deterministic_forward.1} parent=1 // pred_region
      %19 = vsyncadd [#allocation3], 0
      %s20 = sshll.u32 %s1, 4
      %s21 = int_to_ptr.hbm [resolvable:$true] %s20
      %s22 = sshll.u32 [#allocation2], 4
      %s23 = int_to_ptr.vmem [resolvable:$true] %s22
      %28 = dma.hbm_to_vmem [thread:$0]  %s21, 1024, %s23, [#allocation3], 64, 64, 4
    $region9: #{make_deterministic_forward.1} parent=1 // pred_fallthru
      _
    // Predicated region
    $region10: #{make_deterministic_forward.1} parent=1 // pred_check
      _
    $region11: #{make_deterministic_forward.1} parent=1 // pred_check_branch
      %30 = sbr.rel (0) target = $region13
    $region12: #{make_deterministic_forward.1} parent=1 // pred_region
      %32 = vsyncadd [#allocation5], 0
      %s33 = sshll.u32 %s2, 4
      %s34 = int_to_ptr.hbm [resolvable:$true] %s33
      %s35 = sshll.u32 [#allocation4], 4
      %s36 = int_to_ptr.vmem [resolvable:$true] %s35
      %41 = dma.hbm_to_vmem [thread:$0]  %s34, 1024, %s36, [#allocation5], 64, 64, 4
    $region13: #{make_deterministic_forward.1} parent=1 // pred_fallthru
      _
    // Predicated region
    $region14: #{make_deterministic_forward.1} parent=1 // pred_check
      _
    $region15: #{make_deterministic_forward.1} parent=1 // pred_check_branch
      %43 = sbr.rel (0) target = $region17
    $region16: #{make_deterministic_forward.1} parent=1 // pred_region
      %45 = vsyncadd [#allocation5], 0
      %s46 = sshll.u32 %s3, 4
      %s47 = int_to_ptr.hbm [resolvable:$true] %s46
      %s48 = sshll.u32 [#allocation6], 4
      %s49 = int_to_ptr.vmem [resolvable:$true] %s48
      %54 = dma.hbm_to_vmem [thread:$0]  %s47, 1024, %s49, [#allocation5], 64, 64, 4
    $region17: #{make_deterministic_forward.1} parent=1 // pred_fallthru
      _
    // Predicated region
    $region18: #{make_deterministic_forward.1} parent=1 // pred_check
      _
    $region19: #{make_deterministic_forward.1} parent=1 // pred_check_branch
      %56 = sbr.rel (0) target = $region21
    $region20: #{make_deterministic_forward.1} parent=1 // pred_region
      _
    $region21: #{make_deterministic_forward.1} parent=1 // pred_fallthru
      _
    // Predicated region
    $region22: #{make_deterministic_forward.1} parent=1 // pred_check
      _
    $region23: #{make_deterministic_forward.1} parent=1 // pred_check_branch
      %58 = sbr.rel (0) target = $region25
    $region24: #{make_deterministic_forward.1} parent=1 // pred_region
      %60 = dma.done [#allocation3], 1024
    $region25: #{make_deterministic_forward.1} parent=1 // pred_fallthru
      _
    // Predicated region
    $region26: #{make_deterministic_forward.1} parent=1 // pred_check
      _
    $region27: #{make_deterministic_forward.1} parent=1 // pred_check_branch
      %62 = sbr.rel (0) target = $region29
    $region28: #{make_deterministic_forward.1} parent=1 // pred_region
      %64 = dma.done [#allocation5], 1024
    $region29: #{make_deterministic_forward.1} parent=1 // pred_fallthru
      _
    // Predicated region
    $region30: #{make_deterministic_forward.1} parent=1 // pred_check
      _
    $region31: #{make_deterministic_forward.1} parent=1 // pred_check_branch
      %66 = sbr.rel (0) target = $region33
    $region32: #{make_deterministic_forward.1} parent=1 // pred_region
      %68 = dma.done [#allocation5], 1024
    $region33: #{make_deterministic_forward.1} parent=1 // pred_fallthru
      _
    %v69 = vld [vmem:[%s0] sm:$0xf]
    %v70 = vld [vmem:[%s0 + $0x4] sm:$0xf]
    %v71 = vld [vmem:[%s4] sm:$0x1]
    %v72 = vld [vmem:[%s4 + $0x1] sm:$0x1]
    %v73 = vld [vmem:[%s4 + $0x2] sm:$0x1]
    %v74 = vld [vmem:[#allocation2] sm:$0xf]
    %v75 = vld [vmem:[#allocation2 + $0x4] sm:$0xf]
    %v76 = vld [vmem:[#allocation2 + $0x8] sm:$0xf]
    %v77 = vld [vmem:[#allocation2 + $0xc] sm:$0xf]
    %v78 = vld [vmem:[#allocation2 + $0x10] sm:$0xf]
    %v79 = vld [vmem:[#allocation2 + $0x14] sm:$0xf]
    %v80 = vld [vmem:[#allocation2 + $0x18] sm:$0xf]
    %v81 = vld [vmem:[#allocation2 + $0x1c] sm:$0xf]
    %v82 = vld [vmem:[#allocation2 + $0x20] sm:$0xf]
    %v83 = vld [vmem:[#allocation2 + $0x24] sm:$0xf]
    %v84 = vld [vmem:[#allocation2 + $0x28] sm:$0xf]
    %v85 = vld [vmem:[#allocation2 + $0x2c] sm:$0xf]
    %v86 = vld [vmem:[#allocation2 + $0x30] sm:$0xf]
    %v87 = vld [vmem:[#allocation2 + $0x34] sm:$0xf]
    %v88 = vld [vmem:[#allocation2 + $0x38] sm:$0xf]
    %v89 = vld [vmem:[#allocation2 + $0x3c] sm:$0xf]
    %v91 = vperm.slane %v71, 0
    %v95 = vunpack.c.l.b16 %v69
    %v96 = vunpack.c.l.b16 %v70
    %v97 = vpack.c.b16 %v96, %v95
    %v115 = vunpack.c.l.b16 %v74
    %v116 = vunpack.c.l.b16 %v75
    %v117 = vunpack.c.l.b16 %v76
    %v118 = vunpack.c.l.b16 %v77
    %v119 = vunpack.c.l.b16 %v78
    %v120 = vunpack.c.l.b16 %v79
    %v121 = vunpack.c.l.b16 %v80
    %v122 = vunpack.c.l.b16 %v81
    %v123 = vunpack.c.l.b16 %v82
    %v124 = vunpack.c.l.b16 %v83
    %v125 = vunpack.c.l.b16 %v84
    %v126 = vunpack.c.l.b16 %v85
    %v127 = vunpack.c.l.b16 %v86
    %v128 = vunpack.c.l.b16 %v87
    %v129 = vunpack.c.l.b16 %v88
    %v130 = vunpack.c.l.b16 %v89
    %v131 = vpack.c.b16 %v116, %v115
    %v132 = vpack.c.b16 %v118, %v117
    %v133 = vpack.c.b16 %v120, %v119
    %v134 = vpack.c.b16 %v122, %v121
    %v135 = vpack.c.b16 %v124, %v123
    %v136 = vpack.c.b16 %v126, %v125
    %v137 = vpack.c.b16 %v128, %v127
    %v138 = vpack.c.b16 %v130, %v129
    %147 = vmatpush.bf16.msra.mxu0 %v138
    %148 = vmatpush.bf16.msra.mxu0 %v137
    %149 = vmatpush.bf16.msra.mxu0 %v136
    %150 = vmatpush.bf16.msra.mxu0 %v135
    %151 = vmatpush.bf16.msra.mxu0 %v134
    %152 = vmatpush.bf16.msra.mxu0 %v133
    %153 = vmatpush.bf16.msra.mxu0 %v132
    %154 = vmatpush.bf16.msra.mxu0 %v131
    %155 = vmatmul.bf16.gmra.mxu0 %v97
    %v156 = vpop.f32.mrf.mxu0
    %v157 = vadd.f32 %v91, %v156
    %v158 = vpop.f32.mrf.mxu0
    %v159 = vadd.f32 %v91, %v158
    %160 = vdwg.mxu0
    %v161 = vmax.f32 %v157, 0.0
    %v162 = vmax.f32 %v159, 0.0
    %v163 = vpack.c.bf16 %v162, %v161
    %v164 = vld [vmem:[#allocation4] sm:$0xf]
    %v165 = vld [vmem:[#allocation4 + $0x4] sm:$0xf]
    %v166 = vld [vmem:[#allocation4 + $0x8] sm:$0xf]
    %v167 = vld [vmem:[#allocation4 + $0xc] sm:$0xf]
    %v168 = vld [vmem:[#allocation4 + $0x10] sm:$0xf]
    %v169 = vld [vmem:[#allocation4 + $0x14] sm:$0xf]
    %v170 = vld [vmem:[#allocation4 + $0x18] sm:$0xf]
    %v171 = vld [vmem:[#allocation4 + $0x1c] sm:$0xf]
    %v172 = vld [vmem:[#allocation4 + $0x20] sm:$0xf]
    %v173 = vld [vmem:[#allocation4 + $0x24] sm:$0xf]
    %v174 = vld [vmem:[#allocation4 + $0x28] sm:$0xf]
    %v175 = vld [vmem:[#allocation4 + $0x2c] sm:$0xf]
    %v176 = vld [vmem:[#allocation4 + $0x30] sm:$0xf]
    %v177 = vld [vmem:[#allocation4 + $0x34] sm:$0xf]
    %v178 = vld [vmem:[#allocation4 + $0x38] sm:$0xf]
    %v179 = vld [vmem:[#allocation4 + $0x3c] sm:$0xf]
    %v181 = vperm.slane %v72, 0
    %v199 = vunpack.c.l.b16 %v164
    %v200 = vunpack.c.l.b16 %v165
    %v201 = vunpack.c.l.b16 %v166
    %v202 = vunpack.c.l.b16 %v167
    %v203 = vunpack.c.l.b16 %v168
    %v204 = vunpack.c.l.b16 %v169
    %v205 = vunpack.c.l.b16 %v170
    %v206 = vunpack.c.l.b16 %v171
    %v207 = vunpack.c.l.b16 %v172
    %v208 = vunpack.c.l.b16 %v173
    %v209 = vunpack.c.l.b16 %v174
    %v210 = vunpack.c.l.b16 %v175
    %v211 = vunpack.c.l.b16 %v176
    %v212 = vunpack.c.l.b16 %v177
    %v213 = vunpack.c.l.b16 %v178
    %v214 = vunpack.c.l.b16 %v179
    %v215 = vpack.c.b16 %v200, %v199
    %v216 = vpack.c.b16 %v202, %v201
    %v217 = vpack.c.b16 %v204, %v203
    %v218 = vpack.c.b16 %v206, %v205
    %v219 = vpack.c.b16 %v208, %v207
    %v220 = vpack.c.b16 %v210, %v209
    %v221 = vpack.c.b16 %v212, %v211
    %v222 = vpack.c.b16 %v214, %v213
    %231 = vmatpush.bf16.msra.mxu0 %v222
    %232 = vmatpush.bf16.msra.mxu0 %v221
    %233 = vmatpush.bf16.msra.mxu0 %v220
    %234 = vmatpush.bf16.msra.mxu0 %v219
    %235 = vmatpush.bf16.msra.mxu0 %v218
    %236 = vmatpush.bf16.msra.mxu0 %v217
    %237 = vmatpush.bf16.msra.mxu0 %v216
    %238 = vmatpush.bf16.msra.mxu0 %v215
    %239 = vmatmul.bf16.gmra.mxu0 %v163
    %v240 = vpop.f32.mrf.mxu0
    %v241 = vadd.f32 %v181, %v240
    %v242 = vpop.f32.mrf.mxu0
    %v243 = vadd.f32 %v181, %v242
    %244 = vdwg.mxu0
    %v245 = vmax.f32 %v241, 0.0
    %v246 = vmax.f32 %v243, 0.0
    %v247 = vpack.c.bf16 %v246, %v245
    %v248 = vld [vmem:[#allocation6] sm:$0xf]
    %v249 = vld [vmem:[#allocation6 + $0x4] sm:$0xf]
    %v250 = vld [vmem:[#allocation6 + $0x8] sm:$0xf]
    %v251 = vld [vmem:[#allocation6 + $0xc] sm:$0xf]
    %v252 = vld [vmem:[#allocation6 + $0x10] sm:$0xf]
    %v253 = vld [vmem:[#allocation6 + $0x14] sm:$0xf]
    %v254 = vld [vmem:[#allocation6 + $0x18] sm:$0xf]
    %v255 = vld [vmem:[#allocation6 + $0x1c] sm:$0xf]
    %v256 = vld [vmem:[#allocation6 + $0x20] sm:$0xf]
    %v257 = vld [vmem:[#allocation6 + $0x24] sm:$0xf]
    %v258 = vld [vmem:[#allocation6 + $0x28] sm:$0xf]
    %v259 = vld [vmem:[#allocation6 + $0x2c] sm:$0xf]
    %v260 = vld [vmem:[#allocation6 + $0x30] sm:$0xf]
    %v261 = vld [vmem:[#allocation6 + $0x34] sm:$0xf]
    %v262 = vld [vmem:[#allocation6 + $0x38] sm:$0xf]
    %v263 = vld [vmem:[#allocation6 + $0x3c] sm:$0xf]
    %v265 = vperm.slane %v73, 0
    %v283 = vunpack.c.l.b16 %v248
    %v284 = vunpack.c.l.b16 %v249
    %v285 = vunpack.c.l.b16 %v250
    %v286 = vunpack.c.l.b16 %v251
    %v287 = vunpack.c.l.b16 %v252
    %v288 = vunpack.c.l.b16 %v253
    %v289 = vunpack.c.l.b16 %v254
    %v290 = vunpack.c.l.b16 %v255
    %v291 = vunpack.c.l.b16 %v256
    %v292 = vunpack.c.l.b16 %v257
    %v293 = vunpack.c.l.b16 %v258
    %v294 = vunpack.c.l.b16 %v259
    %v295 = vunpack.c.l.b16 %v260
    %v296 = vunpack.c.l.b16 %v261
    %v297 = vunpack.c.l.b16 %v262
    %v298 = vunpack.c.l.b16 %v263
    %v299 = vpack.c.b16 %v284, %v283
    %v300 = vpack.c.b16 %v286, %v285
    %v301 = vpack.c.b16 %v288, %v287
    %v302 = vpack.c.b16 %v290, %v289
    %v303 = vpack.c.b16 %v292, %v291
    %v304 = vpack.c.b16 %v294, %v293
    %v305 = vpack.c.b16 %v296, %v295
    %v306 = vpack.c.b16 %v298, %v297
    %315 = vmatpush.bf16.msra.mxu0 %v306
    %316 = vmatpush.bf16.msra.mxu0 %v305
    %317 = vmatpush.bf16.msra.mxu0 %v304
    %318 = vmatpush.bf16.msra.mxu0 %v303
    %319 = vmatpush.bf16.msra.mxu0 %v302
    %320 = vmatpush.bf16.msra.mxu0 %v301
    %321 = vmatpush.bf16.msra.mxu0 %v300
    %322 = vmatpush.bf16.msra.mxu0 %v299
    %323 = vmatmul.bf16.gmra.mxu0 %v247
    %v324 = vpop.f32.mrf.mxu0
    %v325 = vadd.f32 %v265, %v324
    %v326 = vpop.f32.mrf.mxu0
    %v327 = vadd.f32 %v265, %v326
    %328 = vdwg.mxu0
    %v329 = vtanh.pop %v325
    %v330 = vtanh.pop %v327
    %331 = vst [vmem:[%s5] sm:$0xff] %v329
    %332 = vst [vmem:[%s5 + $0x8] sm:$0xff] %v330
    %333 = vst [vmem:[%s6] sm:$0xff] %v325
    %334 = vst [vmem:[%s6 + $0x8] sm:$0xff] %v327
    // Predicated region
    $region34: #{make_deterministic_forward.1} parent=1 // pred_check
      _
    $region35: #{make_deterministic_forward.1} parent=1 // pred_check_branch
      %336 = sbr.rel (0) target = $region37
    $region36: #{make_deterministic_forward.1} parent=1 // pred_region
      _
    $region37: #{make_deterministic_forward.1} parent=1 // pred_fallthru
      _
    // Predicated region
    $region38: #{make_deterministic_forward.1} parent=1 // pred_check
      _
    $region39: #{make_deterministic_forward.1} parent=1 // pred_check_branch
      %338 = sbr.rel (0) target = $region41
    $region40: #{make_deterministic_forward.1} parent=1 // pred_region
      _
    $region41: #{make_deterministic_forward.1} parent=1 // pred_fallthru
      _
    // Predicated region
    $region42: #{make_deterministic_forward.1} parent=1 // pred_check
      _
    $region43: #{make_deterministic_forward.1} parent=1 // pred_check_branch
      %340 = sbr.rel (0) target = $region45
    $region44: #{make_deterministic_forward.1} parent=1 // pred_region
      _
    $region45: #{make_deterministic_forward.1} parent=1 // pred_fallthru
      _
    // Predicated region
    $region46: #{make_deterministic_forward.1} parent=1 // pred_check
      _
    $region47: #{make_deterministic_forward.1} parent=1 // pred_check_branch
      %342 = sbr.rel (0) target = $region49
    $region48: #{make_deterministic_forward.1} parent=1 // pred_region
      _
    $region49: #{make_deterministic_forward.1} parent=1 // pred_fallthru
      _
    %343 = vsyncpa [#allocation3], 1
    %344 = vsyncpa [#allocation5], 1

</llo_original>
